<compile_context>
chip_gen: v5e
topology: v5e:2x2
jax: 0.10.0
libtpu: 0.0.40
codegen_flags: <defaults>
</compile_context>

<pallas_src>
import jax
import jax.numpy as jnp
import numpy as np
from jax.experimental import pallas as pl
from jax.experimental.pallas import tpu as pltpu


def _drop_path_kernel(scale_ref, x_ref, o_ref):
    # scale_ref: (bb, 1) f32 per-sample scale (0 or 1/keep_prob)
    # x_ref / o_ref: (bb, bn) activation tiles
    x = x_ref[...]
    o_ref[...] = (x.astype(jnp.float32) * scale_ref[...]).astype(o_ref.dtype)


def _round_up(v, m):
    return ((v + m - 1) // m) * m


def drop_path_pallas(x, drop_prob, key, training=True):
    """Pallas DropPath forward. x: (B, ...) any rank >= 1."""
    if drop_prob is None or drop_prob == 0.0 or not training:
        return x

    keep_prob = 1.0 - float(drop_prob)
    B = x.shape[0]
    N = int(np.prod(x.shape[1:]))
    x2 = x.reshape(B, N)

    # Per-sample keep mask / scale, computed in float32 in the wrapper
    # (B elements -> negligible cost; avoids bf16 threshold quantization).
    u = jax.random.uniform(key, (B, 1), dtype=jnp.float32)
    scale = jnp.floor(keep_prob + u) * (1.0 / keep_prob)  # (B, 1) f32

    # Lane-dense layout: pad the feature axis to a multiple of 128 so stores
    # are unmasked vst; slice the pad off afterwards.
    n_pad = _round_up(N, 128)
    if n_pad != N:
        x2 = jnp.pad(x2, ((0, 0), (0, n_pad - N)))

    # Tile sizes: bn in [128, 2048] (multiple of 128); full batch when small,
    # otherwise a multiple of 8 capped at 256 rows.
    bn = min(n_pad, 2048)
    if B <= 8:
        bb = B
    else:
        bb = min(256, (B // 8) * 8)

    grid = (pl.cdiv(B, bb), pl.cdiv(n_pad, bn))

    # TODO(synk): optional further win — scalar-prefetch the per-sample mask
    # and skip the x DMA entirely (write zeros) for dropped samples via a
    # manual make_async_copy path; omitted here for simplicity.
    out = pl.pallas_call(
        _drop_path_kernel,
        out_shape=jax.ShapeDtypeStruct((B, n_pad), x.dtype),
        grid=grid,
        in_specs=[
            pl.BlockSpec((bb, 1), lambda i, j: (i, 0)),   # per-sample scale
            pl.BlockSpec((bb, bn), lambda i, j: (i, j)),  # activation tile
        ],
        out_specs=pl.BlockSpec((bb, bn), lambda i, j: (i, j)),
        compiler_params=pltpu.CompilerParams(
            dimension_semantics=("parallel", "parallel"),
        ),
    )(scale, x2)

    if n_pad != N:
        out = out[:, :N]
    return out.reshape(x.shape)


def drop_path_ref(x, drop_prob, u, training=True):
    """Pure-JAX reference mirroring the PyTorch implementation."""
    if drop_prob is None or drop_prob == 0.0 or not training:
        return x
    keep_prob = 1.0 - drop_prob
    shape = (x.shape[0],) + (1,) * (x.ndim - 1)
    random_tensor = jnp.floor(keep_prob + u.astype(jnp.float32)).reshape(shape)
    return (x.astype(jnp.float32) / keep_prob * random_tensor).astype(x.dtype)


if __name__ == "__main__":
    key = jax.random.PRNGKey(0)
    kx1, kx2, km1, km2 = jax.random.split(key, 4)
    drop_prob = 0.3

    # Case 1: NCHW input with feature size a multiple of 128 (4*16*16 = 1024).
    x1 = jax.random.normal(kx1, (2, 4, 16, 16), dtype=jnp.float32)
    out1 = jax.block_until_ready(drop_path_pallas(x1, drop_prob, km1, training=True))
    u1 = jax.random.uniform(km1, (x1.shape[0], 1), dtype=jnp.float32)
    ref1 = drop_path_ref(x1, drop_prob, u1, training=True)
    np.testing.assert_allclose(np.asarray(out1), np.asarray(ref1), rtol=1e-6, atol=1e-6)

    # Case 2: feature size NOT a multiple of 128 (3*7*11 = 231) -> padding path.
    x2 = jax.random.normal(kx2, (2, 3, 7, 11), dtype=jnp.float32)
    out2 = jax.block_until_ready(drop_path_pallas(x2, drop_prob, km2, training=True))
    u2 = jax.random.uniform(km2, (x2.shape[0], 1), dtype=jnp.float32)
    ref2 = drop_path_ref(x2, drop_prob, u2, training=True)
    np.testing.assert_allclose(np.asarray(out2), np.asarray(ref2), rtol=1e-6, atol=1e-6)

    # Eval path (identity), matching drop_path(training=False).
    out_eval = jax.block_until_ready(drop_path_pallas(x1, drop_prob, km1, training=False))
    np.testing.assert_allclose(np.asarray(out_eval), np.asarray(x1))

    print("KERNEL_OK")
</pallas_src>

<mosaic_0001>
module attributes {stable_mosaic.version = 11 : i64} {
  func.func @_drop_path_kernel(%arg0: i32, %arg1: i32, %arg2: memref<2x1xf32, #tpu.memory_space<vmem>>, %arg3: memref<2x1024xf32, #tpu.memory_space<vmem>>, %arg4: memref<2x1024xf32, #tpu.memory_space<vmem>>) attributes {dimension_semantics = [#tpu.dimension_semantics<parallel>, #tpu.dimension_semantics<parallel>], iteration_bounds = array<i64: 1, 1>, scalar_prefetch = 0 : i64, scratch_operands = 0 : i64, tpu.core_type = #tpu.core_type<tc>, window_params = [{transform_indices = @transform_0, window_bounds = array<i64: 2, 1>}, {transform_indices = @transform_1, window_bounds = array<i64: 2, 1024>}, {transform_indices = @transform_2, window_bounds = array<i64: 2, 1024>}]} {
    %c0 = arith.constant 0 : index
    %c0_0 = arith.constant 0 : index
    %0 = vector.load %arg3[%c0, %c0_0] : memref<2x1024xf32, #tpu.memory_space<vmem>>, vector<2x1024xf32>
    %c0_1 = arith.constant 0 : index
    %c0_2 = arith.constant 0 : index
    %1 = vector.load %arg2[%c0_1, %c0_2] : memref<2x1xf32, #tpu.memory_space<vmem>>, vector<2x1xf32>
    %2 = vector.broadcast %1 : vector<2x1xf32> to vector<2x1024xf32>
    %3 = arith.mulf %0, %2 : vector<2x1024xf32>
    %c0_3 = arith.constant 0 : index
    %c0_4 = arith.constant 0 : index
    %4 = vector.load %arg4[%c0_3, %c0_4] : memref<2x1024xf32, #tpu.memory_space<vmem>>, vector<2x1024xf32>
    tpu.vector_store %arg4[%c0_3, %c0_4], %3 {strides = array<i32>} : memref<2x1024xf32, #tpu.memory_space<vmem>>, vector<2x1024xf32>,
    return
  }
  func.func @transform_0(%arg0: i32, %arg1: i32) -> (i32, i32) {
    %c0_i32 = arith.constant 0 : i32
    %c0_i32_0 = arith.constant 0 : i32
    return %arg0, %c0_i32 : i32, i32
  }
  func.func @transform_1(%arg0: i32, %arg1: i32) -> (i32, i32) {
    %c0_i32 = arith.constant 0 : i32
    return %arg0, %arg1 : i32, i32
  }
  func.func @transform_2(%arg0: i32, %arg1: i32) -> (i32, i32) {
    %c0_i32 = arith.constant 0 : i32
    return %arg0, %arg1 : i32, i32
  }
}

</mosaic_0001>

<llo_original>
// kernel: tpu_custom_call.1
$region0: #{tpu_custom_call.1}
  #allocation0 [shape = 'u32[]', space=smem, size = 0x4, offset = 0x4, fixed_abs, tag = 'smem constant byte address 0x4 - core index']
  #allocation1 [shape = 'u32[72,128]{1,0:T(1,128)}', space=vmem, size = 0x9000, scoped, tag = 'internal scratch']
  %s0 = inlined_call_operand.vmem [shape: f32[2,1], index: 0, kind: input, shape index: {}]
  %s1 = inlined_call_operand.hbm [shape: f32[2,1024], index: 1, kind: input, shape index: {}]
  %s2 = inlined_call_operand.hbm [shape: f32[2,1024], index: 2, kind: output, shape index: {}]
  %s3 = sld [smem:[#allocation0]]
  $region22: #{tpu_custom_call.1} parent=0
    _
  %s5 = ssub.s32 1, %s3
  %s6 = scalar_select 0, %s5, %s3
  $region1: #{tpu_custom_call.1} parent=0
    #allocation2 [shape = 'u8[8192]{0}', space=vmem, size = 0x2000, scoped, tag = 'input window, operand 1, single buffered']
    #allocation3 [shape = 's32[1]{0}', space=sflag, size = 0x4, scoped, tag = 'scoped memory for tpu_custom_call.1']
    #allocation4 [shape = 's32[1]{0}', space=sflag, size = 0x4, scoped, tag = 'scoped memory for tpu_custom_call.1']
    #allocation5 [shape = 'u8[8192]{0}', space=vmem, size = 0x2000, scoped, tag = 'output window, operand 0, single buffered']
    %7 = vsyncpa [#allocation3], 0
    %8 = vsyncpa [#allocation4], 0
    // Predicated region
    $region2: #{tpu_custom_call.1} parent=1 // pred_check
      _
    $region3: #{tpu_custom_call.1} parent=1 // pred_check_branch
      %10 = sbr.rel (0) target = $region5
    $region4: #{tpu_custom_call.1} parent=1 // pred_region
      _
    $region5: #{tpu_custom_call.1} parent=1 // pred_fallthru
      _
    // Predicated region
    $region6: #{tpu_custom_call.1} parent=1 // pred_check
      _
    $region7: #{tpu_custom_call.1} parent=1 // pred_check_branch
      %12 = sbr.rel (0) target = $region9
    $region8: #{tpu_custom_call.1} parent=1 // pred_region
      %14 = vsyncadd [#allocation3], 0
      %s16 = sshll.u32 %s1, 4
      %s17 = int_to_ptr.hbm [resolvable:$true] %s16
      %s18 = sshll.u32 [#allocation2], 4
      %s19 = int_to_ptr.vmem [resolvable:$true] %s18
      %21 = dma.hbm_to_vmem [thread:$0]  %s17, 256, %s19, [#allocation3]
    $region9: #{tpu_custom_call.1} parent=1 // pred_fallthru
      _
    // Predicated region
    $region10: #{tpu_custom_call.1} parent=1 // pred_check
      _
    $region11: #{tpu_custom_call.1} parent=1 // pred_check_branch
      %23 = sbr.rel (0) target = $region13
    $region12: #{tpu_custom_call.1} parent=1 // pred_region
      %25 = dma.done [#allocation3], 256
    $region13: #{tpu_custom_call.1} parent=1 // pred_fallthru
      _
    %v26 = vld [vmem:[#allocation2] sm:$0xff]
    %v27 = vld [vmem:[#allocation2 + $0x8] sm:$0xff]
    %v28 = vld [vmem:[%s0] sm:$0x3]
    %30 = vset.pattern.permute.xlu0 0
    %31 = vperm.xlu0 %30, %v28
    %v32 = vpop.permute.xlu0 %31
    %v34 = vunpack.c.l.s4 269488144
    %v35 = vunpack.c.0.s8 %v34
    %v36 = vperm.slane %v32, %v35
    %v38 = vmul.f32 %v26, %v36
    %v39 = vmul.f32 %v27, %v36
    %40 = vst [vmem:[#allocation5] sm:$0xff] %v38
    %41 = vst [vmem:[#allocation5 + $0x8] sm:$0xff] %v39
    // Predicated region
    $region14: #{tpu_custom_call.1} parent=1 // pred_check
      _
    $region15: #{tpu_custom_call.1} parent=1 // pred_check_branch
      %43 = sbr.rel (0) target = $region17
    $region16: #{tpu_custom_call.1} parent=1 // pred_region
      %45 = vsyncadd [#allocation4], 0
      %s47 = sshll.u32 [#allocation5], 4
      %s48 = int_to_ptr.vmem [resolvable:$true] %s47
      %s49 = sshll.u32 %s2, 4
      %s50 = int_to_ptr.hbm [resolvable:$true] %s49
      %52 = dma.vmem_to_hbm [thread:$0]  %s48, 256, %s50, [#allocation4]
    $region17: #{tpu_custom_call.1} parent=1 // pred_fallthru
      _
    // Predicated region
    $region18: #{tpu_custom_call.1} parent=1 // pred_check
      _
    $region19: #{tpu_custom_call.1} parent=1 // pred_check_branch
      %54 = sbr.rel (0) target = $region21
    $region20: #{tpu_custom_call.1} parent=1 // pred_region
      %56 = dma.done [#allocation4], 256
    $region21: #{tpu_custom_call.1} parent=1 // pred_fallthru
      _
    %57 = vsyncpa [#allocation3], 1
    %58 = vsyncpa [#allocation4], 1

</llo_original>
